<compile_context>
chip_gen: v7x
topology: tpu7x:2x2x1
jax: 0.10.0
libtpu: 0.0.40
codegen_flags: <defaults>
</compile_context>

<pallas_src>
import functools

import jax
import jax.numpy as jnp
from jax import lax
from jax.experimental import pallas as pl
from jax.experimental.pallas import tpu as pltpu


_CHUNK_ROWS = 8  # one sublane group per vreg-resident sub-tile


def _round_up(x, m):
    return ((x + m - 1) // m) * m


def _positional_kernel(x_ref, wb_ref, o_ref, *, H, W):
    """One (R, HWp) row-block per grid step; each row is an independent plane.

    x_ref  : (R, HWp)  flattened (H, W) planes (zero-padded to HWp lanes)
    wb_ref : (R, 10)   per-row [9 depthwise tap weights, bias]
    o_ref  : (R, HWp)  gated output
    """
    R, HWp = x_ref.shape
    HW = H * W
    f32 = jnp.float32

    # Tap-validity masks generated in-kernel (no HBM mask stream), factored as
    # rowvalid(dh) * colvalid(dw).  Row masks need only flat-index compares.
    pidx = lax.broadcasted_iota(jnp.int32, (1, HWp), 1)
    if (W & (W - 1)) == 0:                     # power-of-two width: cheap mod
        col = jnp.bitwise_and(pidx, W - 1)
    else:
        col = lax.rem(pidx, W)
    row_ok_m1 = jnp.broadcast_to((pidx >= W).astype(f32), (_CHUNK_ROWS, HWp))
    row_ok_p1 = jnp.broadcast_to((pidx < HW - W).astype(f32), (_CHUNK_ROWS, HWp))
    col_ok_m1 = jnp.broadcast_to((col != 0).astype(f32), (_CHUNK_ROWS, HWp))
    col_ok_p1 = jnp.broadcast_to((col != W - 1).astype(f32), (_CHUNK_ROWS, HWp))

    n_chunks = R // _CHUNK_ROWS

    def chunk(c, carry):
        r0 = pl.multiple_of(c * _CHUNK_ROWS, _CHUNK_ROWS)
        xv = x_ref[pl.ds(r0, _CHUNK_ROWS), :].astype(f32)   # cast once
        wv = wb_ref[pl.ds(r0, _CHUNK_ROWS), :].astype(f32)  # (8, 10)

        # Row-shifted, row-masked planes (lane rolls run on the XLU slot).
        y_m1 = pltpu.roll(xv, shift=W, axis=1) * row_ok_m1          # x[h-1, w]
        y_p1 = pltpu.roll(xv, shift=HWp - W, axis=1) * row_ok_p1    # x[h+1, w]

        # Per-output-column weighted sums over dh (9 MACs).  Weight layout
        # matches weight.reshape(C, 9), tap index t = (dh+1)*3 + (dw+1).
        t_m1 = wv[:, 0:1] * y_m1 + wv[:, 3:4] * xv + wv[:, 6:7] * y_p1
        t_0 = wv[:, 1:2] * y_m1 + wv[:, 4:5] * xv + wv[:, 7:8] * y_p1
        t_p1 = wv[:, 2:3] * y_m1 + wv[:, 5:6] * xv + wv[:, 8:9] * y_p1

        acc = wv[:, 9:10] + t_0
        acc = acc + col_ok_m1 * pltpu.roll(t_m1, shift=1, axis=1)        # w-1
        acc = acc + col_ok_p1 * pltpu.roll(t_p1, shift=HWp - 1, axis=1)  # w+1

        # sigmoid(acc) = 0.5*tanh(0.5*acc) + 0.5 : one EUP op, no clamp needed.
        gate = 0.5 * jnp.tanh(0.5 * acc) + 0.5
        o_ref[pl.ds(r0, _CHUNK_ROWS), :] = (xv * gate).astype(o_ref.dtype)
        return carry

    # Vreg-resident sub-tiling: the tap+sigmoid chain stays live over one
    # (8, HWp) chunk at a time instead of full-block temporaries in VMEM.
    lax.fori_loop(0, n_chunks, chunk, 0,
                  unroll=True if n_chunks <= 8 else 4)


def _vmem_limit_bytes():
    """Generation-aware scoped-VMEM limit (~half of physical, capped at 64 MiB)."""
    cap = 64 * 1024 * 1024  # conservative fallback (v7x per-core VMEM)
    try:
        info = pltpu.get_tpu_info()
        cap = int(getattr(info, "vmem_capacity_bytes", cap) or cap)
    except Exception:
        pass
    return int(min(cap // 2, 64 * 1024 * 1024))


def _pick_row_block(rows_pad, hwp, in_itemsize, out_itemsize, vmem_limit):
    # ~Half the VMEM limit goes to the double-buffered in+out blocks; the rest
    # is headroom for per-chunk intermediates and compiler scratch.
    budget = vmem_limit // 2
    bytes_per_row = hwp * 2 * (in_itemsize + out_itemsize)
    r = (budget // max(bytes_per_row, 1)) // _CHUNK_ROWS * _CHUNK_ROWS
    r = max(_CHUNK_ROWS, min(r, rows_pad))
    # Guarantee >= 2 grid steps when possible so the "parallel" axis can shard
    # across both TensorCores on v7x.
    if rows_pad >= 2 * _CHUNK_ROWS:
        r = min(r, _round_up(pl.cdiv(rows_pad, 2), _CHUNK_ROWS))
    # TODO(synk): halo-tiled H fallback when even an 8-row whole-plane block
    # exceeds the VMEM budget (very large H*W, tightest on v7x's 64 MiB).
    return int(r)


def positional_forward(x_nchw, weight_dw, bias):
    """x_nchw: (N, C, H, W); weight_dw: (C, 1, 3, 3) depthwise; bias: (C,)."""
    N, C, H, W = x_nchw.shape
    HW = H * W
    rows = N * C
    dtype = x_nchw.dtype

    # Free reshape: NCHW -> (N*C, H*W); H*W sits on the lane axis.
    x2d = x_nchw.reshape(rows, HW)

    # Pad to lane-dense / sublane-aligned shapes only when necessary.
    HWp = _round_up(HW, 128)
    rows_pad = _round_up(rows, _CHUNK_ROWS)
    if HWp != HW or rows_pad != rows:
        x2d = jnp.pad(x2d, ((0, rows_pad - rows), (0, HWp - HW)))

    # Per-row parameters: 9 taps + bias (tiny; tiled over the batch dim).
    w9 = weight_dw.reshape(C, 9).astype(jnp.float32)
    wb = jnp.concatenate([w9, bias.reshape(C, 1).astype(jnp.float32)], axis=1)
    wb = jnp.tile(wb, (N, 1))                                   # (rows, 10)
    if rows_pad != rows:
        wb = jnp.pad(wb, ((0, rows_pad - rows), (0, 0)))

    vmem_limit = _vmem_limit_bytes()
    itemsize = jnp.dtype(dtype).itemsize
    R = _pick_row_block(rows_pad, HWp, itemsize, itemsize, vmem_limit)
    grid = (pl.cdiv(rows_pad, R),)   # ragged last block allowed (writes masked)

    out2d = pl.pallas_call(
        functools.partial(_positional_kernel, H=H, W=W),
        out_shape=jax.ShapeDtypeStruct((rows_pad, HWp), dtype),
        grid_spec=pltpu.PrefetchScalarGridSpec(
            num_scalar_prefetch=0,
            grid=grid,
            in_specs=[
                pl.BlockSpec((R, HWp), lambda r: (r, 0)),   # activations
                pl.BlockSpec((R, 10), lambda r: (r, 0)),    # per-row taps+bias
            ],
            out_specs=pl.BlockSpec((R, HWp), lambda r: (r, 0)),
        ),
        compiler_params=pltpu.CompilerParams(
            dimension_semantics=("parallel",),
            vmem_limit_bytes=vmem_limit,
        ),
    )(x2d, wb)

    if rows_pad != rows or HWp != HW:
        out2d = out2d[:rows, :HW]
    return out2d.reshape(N, C, H, W)


def positional_reference(x_nchw, weight_dw, bias):
    """Pure-JAX reference matching PyTorch F.conv2d(groups=C) + sigmoid gating."""
    C = x_nchw.shape[1]
    conv = lax.conv_general_dilated(
        x_nchw, weight_dw,
        window_strides=(1, 1), padding="SAME",
        feature_group_count=C,
        dimension_numbers=("NCHW", "OIHW", "NCHW"),
    ) + bias.reshape(1, C, 1, 1)
    return x_nchw * jax.nn.sigmoid(conv)


if __name__ == "__main__":
    key = jax.random.PRNGKey(0)
    N, C, H, W = 2, 4, 16, 16

    k_x, k_w, k_b = jax.random.split(key, 3)
    x = jax.random.normal(k_x, (N, C, H, W), dtype=jnp.float32)

    # Conv2d(dim, dim, 3, padding=1, groups=dim): weight (C, 1, 3, 3), bias (C,)
    fan_in = 1 * 3 * 3
    bound = 1.0 / (fan_in ** 0.5)
    weight_dw = jax.random.uniform(k_w, (C, 1, 3, 3), jnp.float32, -bound, bound)
    bias = jax.random.uniform(k_b, (C,), jnp.float32, -bound, bound)

    out = jax.block_until_ready(positional_forward(x, weight_dw, bias))
    ref = jax.block_until_ready(positional_reference(x, weight_dw, bias))

    assert out.shape == (N, C, H, W)
    assert jnp.allclose(out, ref, atol=1e-4, rtol=1e-4), "mismatch vs reference"
    print("KERNEL_OK")
</pallas_src>

<mosaic_0001>
module attributes {stable_mosaic.version = 11 : i64} {
  func.func @_positional_kernel(%arg0: i32, %arg1: memref<8x256xf32, #tpu.memory_space<vmem>>, %arg2: memref<8x10xf32, #tpu.memory_space<vmem>>, %arg3: memref<8x256xf32, #tpu.memory_space<vmem>>) attributes {dimension_semantics = [#tpu.dimension_semantics<parallel>], iteration_bounds = array<i64: 1>, scalar_prefetch = 0 : i64, scratch_operands = 0 : i64, tpu.core_type = #tpu.core_type<tc>, window_params = [{transform_indices = @transform_0, window_bounds = array<i64: 8, 256>}, {transform_indices = @transform_1, window_bounds = array<i64: 8, 10>}, {transform_indices = @transform_2, window_bounds = array<i64: 8, 256>}]} {
    %0 = tpu.iota {dimensions = array<i32: 1>} : vector<1x256xi32>
    %c15_i32 = arith.constant 15 : i32
    %1 = vector.broadcast %c15_i32 : i32 to vector<1x256xi32>
    %2 = arith.andi %0, %1 : vector<1x256xi32>
    %c16_i32 = arith.constant 16 : i32
    %3 = vector.broadcast %c16_i32 : i32 to vector<1x256xi32>
    %4 = arith.cmpi sge, %0, %3 : vector<1x256xi32>
    %5 = arith.extui %4 : vector<1x256xi1> to vector<1x256xi32>
    %6 = arith.sitofp %5 : vector<1x256xi32> to vector<1x256xf32>
    %7 = vector.shape_cast %6 : vector<1x256xf32> to vector<1x256xf32>
    %8 = vector.broadcast %7 : vector<1x256xf32> to vector<8x256xf32>
    %c240_i32 = arith.constant 240 : i32
    %9 = vector.broadcast %c240_i32 : i32 to vector<1x256xi32>
    %10 = arith.cmpi slt, %0, %9 : vector<1x256xi32>
    %11 = arith.extui %10 : vector<1x256xi1> to vector<1x256xi32>
    %12 = arith.sitofp %11 : vector<1x256xi32> to vector<1x256xf32>
    %13 = vector.shape_cast %12 : vector<1x256xf32> to vector<1x256xf32>
    %14 = vector.broadcast %13 : vector<1x256xf32> to vector<8x256xf32>
    %c0_i32 = arith.constant 0 : i32
    %15 = vector.broadcast %c0_i32 : i32 to vector<1x256xi32>
    %16 = arith.cmpi ne, %2, %15 : vector<1x256xi32>
    %17 = arith.extui %16 : vector<1x256xi1> to vector<1x256xi32>
    %18 = arith.sitofp %17 : vector<1x256xi32> to vector<1x256xf32>
    %19 = vector.shape_cast %18 : vector<1x256xf32> to vector<1x256xf32>
    %20 = vector.broadcast %19 : vector<1x256xf32> to vector<8x256xf32>
    %c15_i32_0 = arith.constant 15 : i32
    %21 = vector.broadcast %c15_i32_0 : i32 to vector<1x256xi32>
    %22 = arith.cmpi ne, %2, %21 : vector<1x256xi32>
    %23 = arith.extui %22 : vector<1x256xi1> to vector<1x256xi32>
    %24 = arith.sitofp %23 : vector<1x256xi32> to vector<1x256xf32>
    %25 = vector.shape_cast %24 : vector<1x256xf32> to vector<1x256xf32>
    %26 = vector.broadcast %25 : vector<1x256xf32> to vector<8x256xf32>
    %c0_i32_1 = arith.constant 0 : i32
    %c8_i32 = arith.constant 8 : i32
    %27 = arith.muli %c0_i32_1, %c8_i32 : i32
    %28 = tpu.assume_multiple %27, 8 : i32
    %29 = arith.index_cast %28 : i32 to index
    %c0 = arith.constant 0 : index
    %30 = vector.load %arg1[%29, %c0] : memref<8x256xf32, #tpu.memory_space<vmem>>, vector<8x256xf32>
    %31 = arith.index_cast %28 : i32 to index
    %c0_2 = arith.constant 0 : index
    %32 = vector.load %arg2[%31, %c0_2] : memref<8x10xf32, #tpu.memory_space<vmem>>, vector<8x10xf32>
    %c16_i32_3 = arith.constant 16 : i32
    %33 = tpu.dynamic_rotate %30 by %c16_i32_3 dim 1 : vector<8x256xf32>, i32 -> vector<8x256xf32>
    %34 = arith.mulf %33, %8 : vector<8x256xf32>
    %c240_i32_4 = arith.constant 240 : i32
    %35 = tpu.dynamic_rotate %30 by %c240_i32_4 dim 1 : vector<8x256xf32>, i32 -> vector<8x256xf32>
    %36 = arith.mulf %35, %14 : vector<8x256xf32>
    %37 = vector.extract_strided_slice %32 {offsets = [0, 0], sizes = [8, 1], strides = [1, 1]} : vector<8x10xf32> to vector<8x1xf32>
    %38 = vector.broadcast %37 : vector<8x1xf32> to vector<8x256xf32>
    %39 = arith.mulf %38, %34 : vector<8x256xf32>
    %40 = vector.extract_strided_slice %32 {offsets = [0, 3], sizes = [8, 1], strides = [1, 1]} : vector<8x10xf32> to vector<8x1xf32>
    %41 = vector.broadcast %40 : vector<8x1xf32> to vector<8x256xf32>
    %42 = arith.mulf %41, %30 : vector<8x256xf32>
    %43 = arith.addf %39, %42 : vector<8x256xf32>
    %44 = vector.extract_strided_slice %32 {offsets = [0, 6], sizes = [8, 1], strides = [1, 1]} : vector<8x10xf32> to vector<8x1xf32>
    %45 = vector.broadcast %44 : vector<8x1xf32> to vector<8x256xf32>
    %46 = arith.mulf %45, %36 : vector<8x256xf32>
    %47 = arith.addf %43, %46 : vector<8x256xf32>
    %48 = vector.extract_strided_slice %32 {offsets = [0, 1], sizes = [8, 1], strides = [1, 1]} : vector<8x10xf32> to vector<8x1xf32>
    %49 = vector.broadcast %48 : vector<8x1xf32> to vector<8x256xf32>
    %50 = arith.mulf %49, %34 : vector<8x256xf32>
    %51 = vector.extract_strided_slice %32 {offsets = [0, 4], sizes = [8, 1], strides = [1, 1]} : vector<8x10xf32> to vector<8x1xf32>
    %52 = vector.broadcast %51 : vector<8x1xf32> to vector<8x256xf32>
    %53 = arith.mulf %52, %30 : vector<8x256xf32>
    %54 = arith.addf %50, %53 : vector<8x256xf32>
    %55 = vector.extract_strided_slice %32 {offsets = [0, 7], sizes = [8, 1], strides = [1, 1]} : vector<8x10xf32> to vector<8x1xf32>
    %56 = vector.broadcast %55 : vector<8x1xf32> to vector<8x256xf32>
    %57 = arith.mulf %56, %36 : vector<8x256xf32>
    %58 = arith.addf %54, %57 : vector<8x256xf32>
    %59 = vector.extract_strided_slice %32 {offsets = [0, 2], sizes = [8, 1], strides = [1, 1]} : vector<8x10xf32> to vector<8x1xf32>
    %60 = vector.broadcast %59 : vector<8x1xf32> to vector<8x256xf32>
    %61 = arith.mulf %60, %34 : vector<8x256xf32>
    %62 = vector.extract_strided_slice %32 {offsets = [0, 5], sizes = [8, 1], strides = [1, 1]} : vector<8x10xf32> to vector<8x1xf32>
    %63 = vector.broadcast %62 : vector<8x1xf32> to vector<8x256xf32>
    %64 = arith.mulf %63, %30 : vector<8x256xf32>
    %65 = arith.addf %61, %64 : vector<8x256xf32>
    %66 = vector.extract_strided_slice %32 {offsets = [0, 8], sizes = [8, 1], strides = [1, 1]} : vector<8x10xf32> to vector<8x1xf32>
    %67 = vector.broadcast %66 : vector<8x1xf32> to vector<8x256xf32>
    %68 = arith.mulf %67, %36 : vector<8x256xf32>
    %69 = arith.addf %65, %68 : vector<8x256xf32>
    %70 = vector.extract_strided_slice %32 {offsets = [0, 9], sizes = [8, 1], strides = [1, 1]} : vector<8x10xf32> to vector<8x1xf32>
    %71 = vector.broadcast %70 : vector<8x1xf32> to vector<8x256xf32>
    %72 = arith.addf %71, %58 : vector<8x256xf32>
    %c1_i32 = arith.constant 1 : i32
    %73 = tpu.dynamic_rotate %47 by %c1_i32 dim 1 : vector<8x256xf32>, i32 -> vector<8x256xf32>
    %74 = arith.mulf %20, %73 : vector<8x256xf32>
    %75 = arith.addf %72, %74 : vector<8x256xf32>
    %c255_i32 = arith.constant 255 : i32
    %76 = tpu.dynamic_rotate %69 by %c255_i32 dim 1 : vector<8x256xf32>, i32 -> vector<8x256xf32>
    %77 = arith.mulf %26, %76 : vector<8x256xf32>
    %78 = arith.addf %75, %77 : vector<8x256xf32>
    %cst = arith.constant 5.000000e-01 : f32
    %79 = vector.broadcast %cst : f32 to vector<8x256xf32>
    %80 = arith.mulf %79, %78 : vector<8x256xf32>
    %81 = math.tanh %80 : vector<8x256xf32>
    %cst_5 = arith.constant 5.000000e-01 : f32
    %82 = vector.broadcast %cst_5 : f32 to vector<8x256xf32>
    %83 = arith.mulf %82, %81 : vector<8x256xf32>
    %cst_6 = arith.constant 5.000000e-01 : f32
    %84 = vector.broadcast %cst_6 : f32 to vector<8x256xf32>
    %85 = arith.addf %83, %84 : vector<8x256xf32>
    %86 = arith.mulf %30, %85 : vector<8x256xf32>
    %87 = arith.index_cast %28 : i32 to index
    %c0_7 = arith.constant 0 : index
    %88 = vector.load %arg3[%87, %c0_7] : memref<8x256xf32, #tpu.memory_space<vmem>>, vector<8x256xf32>
    tpu.vector_store %arg3[%87, %c0_7], %86 {strides = array<i32>} : memref<8x256xf32, #tpu.memory_space<vmem>>, vector<8x256xf32>,
    %c1_i32_8 = arith.constant 1 : i32
    return
  }
  func.func @transform_0(%arg0: i32) -> (i32, i32) {
    %c0_i32 = arith.constant 0 : i32
    %c0_i32_0 = arith.constant 0 : i32
    return %arg0, %c0_i32 : i32, i32
  }
  func.func @transform_1(%arg0: i32) -> (i32, i32) {
    %c0_i32 = arith.constant 0 : i32
    %c0_i32_0 = arith.constant 0 : i32
    return %arg0, %c0_i32 : i32, i32
  }
  func.func @transform_2(%arg0: i32) -> (i32, i32) {
    %c0_i32 = arith.constant 0 : i32
    %c0_i32_0 = arith.constant 0 : i32
    return %arg0, %c0_i32 : i32, i32
  }
}

</mosaic_0001>

<llo_original>
// kernel: tpu_custom_call.1
$region0: #{tpu_custom_call.1}
  #allocation0 [shape = 'u32[]', space=smem, size = 0x4, offset = 0x4, fixed_abs, tag = 'smem constant byte address 0x4 - core index']
  #allocation1 [shape = 'u32[144,128]{1,0:T(1,128)}', space=vmem, size = 0x12000, scoped, tag = 'internal scratch']
  %s0 = inlined_call_operand.hbm [shape: f32[8,256], index: 0, kind: input, shape index: {}]
  %s1 = inlined_call_operand.hbm [shape: f32[8,10], index: 1, kind: input, shape index: {}]
  %s2 = inlined_call_operand.hbm [shape: f32[8,256], index: 2, kind: output, shape index: {}]
  %s3 = sld [smem:[#allocation0]]
  $region26: #{tpu_custom_call.1} parent=0
    _
  %s5 = ssub.s32 1, %s3
  %s6 = scalar_select 0, %s5, %s3
  $region1: #{tpu_custom_call.1} parent=0
    #allocation2 [shape = 'u8[8192]{0}', space=vmem, size = 0x2000, scoped, tag = 'input window, operand 0, single buffered']
    #allocation3 [shape = 's32[1]{0}', space=sflag, size = 0x4, scoped, tag = 'scoped memory for tpu_custom_call.1']
    #allocation4 [shape = 's32[1]{0}', space=sflag, size = 0x4, scoped, tag = 'scoped memory for tpu_custom_call.1']
    #allocation5 [shape = 'u8[4096]{0}', space=vmem, size = 0x1000, scoped, tag = 'input window, operand 1, single buffered']
    #allocation6 [shape = 's32[1]{0}', space=sflag, size = 0x4, scoped, tag = 'scoped memory for tpu_custom_call.1']
    #allocation7 [shape = 'u8[8192]{0}', space=vmem, size = 0x2000, scoped, tag = 'output window, operand 0, single buffered']
    %7 = vsyncpa [#allocation3], 0
    %8 = vsyncpa [#allocation6], 0
    %9 = vsyncpa [#allocation4], 0
    // Predicated region
    $region2: #{tpu_custom_call.1} parent=1 // pred_check
      _
    $region3: #{tpu_custom_call.1} parent=1 // pred_check_branch
      %11 = sbr.rel (0) target = $region5
    $region4: #{tpu_custom_call.1} parent=1 // pred_region
      %s13 = ssub.s32 256, 256
      %14 = vsyncadd [#allocation3], %s13
      %s16 = sshll.u32 [#allocation2], 4
      %s17 = int_to_ptr.vmem [resolvable:$true] %s16
      %19 = dma.hbm_to_vmem [thread:$0]  %s0, 256, %s17, [#allocation3]
    $region5: #{tpu_custom_call.1} parent=1 // pred_fallthru
      _
    // Predicated region
    $region6: #{tpu_custom_call.1} parent=1 // pred_check
      _
    $region7: #{tpu_custom_call.1} parent=1 // pred_check_branch
      %21 = sbr.rel (0) target = $region9
    $region8: #{tpu_custom_call.1} parent=1 // pred_region
      %s23 = ssub.s32 128, 128
      %24 = vsyncadd [#allocation6], %s23
      %s26 = sshll.u32 [#allocation5], 4
      %s27 = int_to_ptr.vmem [resolvable:$true] %s26
      %29 = dma.hbm_to_vmem [thread:$0]  %s1, 128, %s27, [#allocation6]
    $region9: #{tpu_custom_call.1} parent=1 // pred_fallthru
      _
    // Predicated region
    $region10: #{tpu_custom_call.1} parent=1 // pred_check
      _
    $region11: #{tpu_custom_call.1} parent=1 // pred_check_branch
      %31 = sbr.rel (0) target = $region13
    $region12: #{tpu_custom_call.1} parent=1 // pred_region
      %32 = dma.done [#allocation3], 256
    $region13: #{tpu_custom_call.1} parent=1 // pred_fallthru
      _
    // Predicated region
    $region14: #{tpu_custom_call.1} parent=1 // pred_check
      _
    $region15: #{tpu_custom_call.1} parent=1 // pred_check_branch
      %34 = sbr.rel (0) target = $region17
    $region16: #{tpu_custom_call.1} parent=1 // pred_region
      %35 = dma.done [#allocation6], 128
    $region17: #{tpu_custom_call.1} parent=1 // pred_fallthru
      _
    %v36 = vlaneseq
    %v37 = vand.u32 %v36, 127
    %v38 = vadd.s32 %v37, 128
    %v39 = vand.u32 %v37, 15
    %v40 = vand.u32 %v38, 15
    %vm41 = vcmp.ge.s32.totalorder %v37, 16
    %vm42 = vcmp.ge.s32.totalorder %v38, 16
    %v43 = vsel %vm41, 1, 0
    %v44 = vsel %vm42, 1, 0
    %v45 = vcvt.s32.f32 %v43
    %v46 = vcvt.s32.f32 %v44
    %vm47 = vcmp.lt.s32.totalorder %v37, 240
    %vm48 = vcmp.lt.s32.totalorder %v38, 240
    %v49 = vsel %vm47, 1, 0
    %v50 = vsel %vm48, 1, 0
    %v51 = vcvt.s32.f32 %v49
    %v52 = vcvt.s32.f32 %v50
    %vm53 = vcmp.ne.s32.totalorder %v39, 0
    %vm54 = vcmp.ne.s32.totalorder %v40, 0
    %v55 = vsel %vm53, 1, 0
    %v56 = vsel %vm54, 1, 0
    %v57 = vcvt.s32.f32 %v55
    %v58 = vcvt.s32.f32 %v56
    %vm59 = vcmp.ne.s32.totalorder %v39, 15
    %vm60 = vcmp.ne.s32.totalorder %v40, 15
    %v61 = vsel %vm59, 1, 0
    %v62 = vsel %vm60, 1, 0
    %v63 = vcvt.s32.f32 %v61
    %v64 = vcvt.s32.f32 %v62
    %s65 = smul.u32 0, 2
    %s66 = smul.addr %s65, 8
    %s67 = scalar_lea.vmem [#allocation2], %s66
    %v68 = vld [vmem:[%s67] sm:$0xff]
    %v69 = vld [vmem:[%s67 + $0x8] sm:$0xff]
    %v70 = vld [vmem:[#allocation5] sm:$0xff]
    %71 = vrot.lane.b32.xlu0 %v68, 16
    %v72 = vpop.permute.xlu0 %71
    %73 = vrot.lane.b32.xlu0 %v69, 16
    %v74 = vpop.permute.xlu0 %73
    %vm75 = vcmp.lt.s32.totalorder %v37, 16
    %v76 = vsel %vm75, %v72, %v74
    %v77 = vsel %vm75, %v74, %v72
    %v78 = vmul.f32 %v77, %v45
    %v79 = vmul.f32 %v76, %v46
    %80 = vrot.lane.b32.xlu0 %v68, 112
    %v81 = vpop.permute.xlu0 %80
    %82 = vrot.lane.b32.xlu0 %v69, 112
    %v83 = vpop.permute.xlu0 %82
    %vm84 = vcmp.lt.s32.totalorder %v37, 112
    %v85 = vsel %vm84, %v81, %v83
    %v86 = vsel %vm84, %v83, %v81
    %v87 = vmul.f32 %v85, %v51
    %v88 = vmul.f32 %v86, %v52
    %90 = vset.pattern.permute.xlu0 0
    %91 = vperm.xlu0 %90, %v70
    %v92 = vpop.permute.xlu0 %91
    %v94 = vmul.f32 %v92, %v78
    %v95 = vmul.f32 %v92, %v79
    %96 = vset.pattern.permute.xlu0 3
    %97 = vperm.xlu0 %96, %v70
    %v98 = vpop.permute.xlu0 %97
    %v100 = vmul.f32 %v98, %v68
    %v101 = vmul.f32 %v98, %v69
    %v102 = vadd.f32 %v94, %v100
    %v103 = vadd.f32 %v95, %v101
    %104 = vset.pattern.permute.xlu0 6
    %105 = vperm.xlu0 %104, %v70
    %v106 = vpop.permute.xlu0 %105
    %v108 = vmul.f32 %v106, %v87
    %v109 = vmul.f32 %v106, %v88
    %v110 = vadd.f32 %v102, %v108
    %v111 = vadd.f32 %v103, %v109
    %112 = vset.pattern.permute.xlu0 1
    %113 = vperm.xlu0 %112, %v70
    %v114 = vpop.permute.xlu0 %113
    %v116 = vmul.f32 %v114, %v78
    %v117 = vmul.f32 %v114, %v79
    %118 = vset.pattern.permute.xlu0 4
    %119 = vperm.xlu0 %118, %v70
    %v120 = vpop.permute.xlu0 %119
    %v122 = vmul.f32 %v120, %v68
    %v123 = vmul.f32 %v120, %v69
    %v124 = vadd.f32 %v116, %v122
    %v125 = vadd.f32 %v117, %v123
    %126 = vset.pattern.permute.xlu0 7
    %127 = vperm.xlu0 %126, %v70
    %v128 = vpop.permute.xlu0 %127
    %v130 = vmul.f32 %v128, %v87
    %v131 = vmul.f32 %v128, %v88
    %v132 = vadd.f32 %v124, %v130
    %v133 = vadd.f32 %v125, %v131
    %134 = vset.pattern.permute.xlu0 2
    %135 = vperm.xlu0 %134, %v70
    %v136 = vpop.permute.xlu0 %135
    %v138 = vmul.f32 %v136, %v78
    %v139 = vmul.f32 %v136, %v79
    %140 = vset.pattern.permute.xlu0 5
    %141 = vperm.xlu0 %140, %v70
    %v142 = vpop.permute.xlu0 %141
    %v144 = vmul.f32 %v142, %v68
    %v145 = vmul.f32 %v142, %v69
    %v146 = vadd.f32 %v138, %v144
    %v147 = vadd.f32 %v139, %v145
    %148 = vset.pattern.permute.xlu0 8
    %149 = vperm.xlu0 %148, %v70
    %v150 = vpop.permute.xlu0 %149
    %v152 = vmul.f32 %v150, %v87
    %v153 = vmul.f32 %v150, %v88
    %v154 = vadd.f32 %v146, %v152
    %v155 = vadd.f32 %v147, %v153
    %156 = vset.pattern.permute.xlu0 9
    %157 = vperm.xlu0 %156, %v70
    %v158 = vpop.permute.xlu0 %157
    %v160 = vadd.f32 %v158, %v132
    %v161 = vadd.f32 %v158, %v133
    %162 = vrot.lane.b32.xlu0 %v110, 1
    %v163 = vpop.permute.xlu0 %162
    %164 = vrot.lane.b32.xlu0 %v111, 1
    %v165 = vpop.permute.xlu0 %164
    %vm166 = vcmp.lt.s32.totalorder %v37, 1
    %v167 = vsel %vm166, %v163, %v165
    %v168 = vsel %vm166, %v165, %v163
    %v169 = vmul.f32 %v57, %v168
    %v170 = vmul.f32 %v58, %v167
    %v171 = vadd.f32 %v160, %v169
    %v172 = vadd.f32 %v161, %v170
    %173 = vrot.lane.b32.xlu0 %v154, 127
    %v174 = vpop.permute.xlu0 %173
    %175 = vrot.lane.b32.xlu0 %v155, 127
    %v176 = vpop.permute.xlu0 %175
    %vm177 = vcmp.lt.s32.totalorder %v37, 127
    %v178 = vsel %vm177, %v174, %v176
    %v179 = vsel %vm177, %v176, %v174
    %v180 = vmul.f32 %v63, %v178
    %v181 = vmul.f32 %v64, %v179
    %v182 = vadd.f32 %v171, %v180
    %v183 = vadd.f32 %v172, %v181
    %v184 = vmul.f32 %v182, 0.5
    %v185 = vmul.f32 %v183, 0.5
    %v186 = vtanh.pop %v184
    %v187 = vtanh.pop %v185
    %v188 = vmul.f32 %v186, 0.5
    %v189 = vmul.f32 %v187, 0.5
    %v190 = vadd.f32 %v188, 0.5
    %v191 = vadd.f32 %v189, 0.5
    %v192 = vmul.f32 %v68, %v190
    %v193 = vmul.f32 %v69, %v191
    %s194 = smul.addr %s65, 8
    %s195 = scalar_lea.vmem [#allocation7], %s194
    %196 = vst [vmem:[%s195] sm:$0xff] %v192
    %197 = vst [vmem:[%s195 + $0x8] sm:$0xff] %v193
    // Predicated region
    $region18: #{tpu_custom_call.1} parent=1 // pred_check
      _
    $region19: #{tpu_custom_call.1} parent=1 // pred_check_branch
      %199 = sbr.rel (0) target = $region21
    $region20: #{tpu_custom_call.1} parent=1 // pred_region
      %s201 = ssub.s32 256, 256
      %202 = vsyncadd [#allocation4], %s201
      %s204 = sshll.u32 [#allocation7], 4
      %s205 = int_to_ptr.vmem [resolvable:$true] %s204
      %207 = dma.vmem_to_hbm [thread:$0]  %s205, 256, %s2, [#allocation4]
    $region21: #{tpu_custom_call.1} parent=1 // pred_fallthru
      _
    // Predicated region
    $region22: #{tpu_custom_call.1} parent=1 // pred_check
      _
    $region23: #{tpu_custom_call.1} parent=1 // pred_check_branch
      %209 = sbr.rel (0) target = $region25
    $region24: #{tpu_custom_call.1} parent=1 // pred_region
      %210 = dma.done [#allocation4], 256
    $region25: #{tpu_custom_call.1} parent=1 // pred_fallthru
      _
    %211 = vsyncpa [#allocation3], 1
    %212 = vsyncpa [#allocation6], 1
    %213 = vsyncpa [#allocation4], 1

</llo_original>
